<compile_context>
chip_gen: v5e
topology: v5e:2x2
jax: 0.10.0
libtpu: 0.0.40
codegen_flags: <defaults>
</compile_context>

<pallas_src>
import math
import functools

import jax
import jax.numpy as jnp
from jax import lax
from jax.experimental import pallas as pl
from jax.experimental.pallas import tpu as pltpu


def _downsample_kernel(x_ref, w0_ref, w1_ref, s_ref, b_ref, o_ref, *,
                       tj, in_lat, out_lon, c, eps, use_bf16, need_lat_mask):
    """One (batch*pl, lat-tile) step.

    x_ref:  (2*tj, out_lon, 2C)  raw input rows (lat pairs); (dlon, c) already
                                 merged on the lane axis by the wrapper view.
    w0_ref: (2C, 2C)   (W * gamma)[:, :2C].T   -- dlat = 0 half of the weight
    w1_ref: (2C, 2C)   (W * gamma)[:, 2C:].T   -- dlat = 1 half
    s_ref:  (1, 2C)    row-sums of W*gamma   (for the folded -mean term)
    b_ref:  (1, 2C)    W @ beta              (folded LayerNorm bias)
    o_ref:  (tj*out_lon, 2C)
    """
    two_c = 2 * c
    x = x_ref[...]                                        # (2*tj, out_lon, 2C)

    # Bottom-row ZeroPad + grid-tail garbage -> exact zeros (so the padded
    # channels contribute zeros to the LayerNorm stats, exactly like the
    # reference).  Static no-op when no padding/tail can occur.
    if need_lat_mask:
        lat0 = pl.program_id(1) * (2 * tj)
        lat_idx = lat0 + lax.broadcasted_iota(jnp.int32, (2 * tj, 1, 1), 0)
        x = jnp.where(lat_idx < in_lat, x, jnp.zeros_like(x))

    # even / odd latitude row of each 2x2 patch -- leading-dim ops only (free).
    x4 = x.reshape(tj, 2, out_lon, two_c)
    a0 = x4[:, 0].reshape(tj * out_lon, two_c)            # dlat = 0 half  (P, 2C)
    a1 = x4[:, 1].reshape(tj * out_lon, two_c)            # dlat = 1 half  (P, 2C)

    # One-pass LayerNorm statistics over the merged 4C channels (f32, lane reduce).
    a0f = a0.astype(jnp.float32)
    a1f = a1.astype(jnp.float32)
    rcp4c = 1.0 / (4.0 * c)
    mean = (jnp.sum(a0f, axis=-1, keepdims=True)
            + jnp.sum(a1f, axis=-1, keepdims=True)) * rcp4c              # (P, 1)
    msq = (jnp.sum(a0f * a0f, axis=-1, keepdims=True)
           + jnp.sum(a1f * a1f, axis=-1, keepdims=True)) * rcp4c
    inv = lax.rsqrt(msq - mean * mean + eps)                             # EUP  (P, 1)

    # MXU: (P, 2C) @ (2C, 2C) per dlat half, f32 accumulation.
    dot_dt = jnp.bfloat16 if use_bf16 else jnp.float32
    z = (jnp.dot(a0.astype(dot_dt), w0_ref[...], preferred_element_type=jnp.float32)
         + jnp.dot(a1.astype(dot_dt), w1_ref[...], preferred_element_type=jnp.float32))

    # Folded LayerNorm affine:  y = ((W*gamma)@x - rowsum(W*gamma)*mean)*inv + W@beta
    y = (z - mean * s_ref[...]) * inv + b_ref[...]
    o_ref[...] = y.astype(o_ref.dtype)


def _pick_tile_lat(tile_lat, out_lat, out_lon):
    """Output-lat rows per grid step; keeps the output block sublane-aligned."""
    tj = max(1, min(int(tile_lat), out_lat))
    if (tj * out_lon) % 8 == 0:
        return tj
    g = 8 // math.gcd(8, out_lon)
    tj_r = ((tj + g - 1) // g) * g
    return tj_r if tj_r <= out_lat else out_lat   # full extent always legal


def downsample3d_forward(x, gamma, beta, w, *, input_resolution, output_resolution,
                         eps=1e-5, tile_lat=4, use_bf16=True, vmem_limit_mib=48):
    """Pallas DownSample3D forward.

    x:     (B, N, C) with N = in_pl*in_lat*in_lon (f32 or bf16; output matches)
    gamma: (4C,)   LayerNorm weight
    beta:  (4C,)   LayerNorm bias
    w:     (2C, 4C)  Linear weight (bias=False)
    returns (B, out_pl*out_lat*out_lon, 2C)

    tile_lat: output latitude rows per grid step (per-step input block is
              2*tile_lat*out_lon*2C elements; lower it for very large lon*C on
              v7x, raise it for small images).
    """
    B, N, C = x.shape
    in_pl, in_lat, in_lon = input_resolution
    out_pl, out_lat, out_lon = output_resolution
    assert N == in_pl * in_lat * in_lon
    assert out_pl == in_pl                       # module never pads pressure levels
    assert 2 * out_lat >= in_lat and 2 * out_lon >= in_lon
    two_c = 2 * C

    h_pad = 2 * out_lat - in_lat
    w_pad = 2 * out_lon - in_lon
    pad_top, pad_left = h_pad // 2, w_pad // 2

    x5 = x.reshape(B * in_pl, in_lat, in_lon, C)
    in_lat_eff = in_lat
    # TODO(synk): fuse the pad_top>0 / odd-longitude cases into the kernel too;
    # the common Pangu case (even lon, bottom-row lat pad) never hits this pad.
    if w_pad > 0 or pad_top > 0:
        x5 = jnp.pad(x5, ((0, 0), (pad_top, 0),
                          (pad_left, w_pad - pad_left), (0, 0)))
        in_lat_eff = in_lat + pad_top
    # Free view: (lon, C) -> (out_lon, 2C); the merged-channel sub-order
    # (dlon, c) is already contiguous in memory, so no data movement here.
    xr = x5.reshape(B * in_pl, in_lat_eff, out_lon, two_c)

    # Fold the LayerNorm affine into the linear weight (constant, done once,
    # already cast to the MXU input dtype so the kernel never re-casts it).
    dot_dtype = jnp.bfloat16 if use_bf16 else jnp.float32
    w_f32 = w.astype(jnp.float32)
    w_eff = w_f32 * gamma.astype(jnp.float32)[None, :]                   # (2C, 4C)
    w0t = jnp.transpose(w_eff[:, :two_c]).astype(dot_dtype)              # (2C, 2C), dlat=0
    w1t = jnp.transpose(w_eff[:, two_c:]).astype(dot_dtype)              # (2C, 2C), dlat=1
    srow = jnp.sum(w_eff, axis=1).reshape(1, two_c)                      # f32
    brow = (w_f32 @ beta.astype(jnp.float32)).reshape(1, two_c)          # f32

    tj = _pick_tile_lat(tile_lat, out_lat, out_lon)
    n_lat = pl.cdiv(out_lat, tj)
    # Any loaded row with absolute lat index >= in_lat_eff (bottom ZeroPad or
    # grid-tail garbage) must be masked to zero inside the kernel.
    need_lat_mask = (n_lat * 2 * tj) > in_lat_eff

    kernel = functools.partial(
        _downsample_kernel, tj=tj, in_lat=in_lat_eff, out_lon=out_lon, c=C,
        eps=float(eps), use_bf16=use_bf16, need_lat_mask=need_lat_mask)

    out = pl.pallas_call(
        kernel,
        out_shape=jax.ShapeDtypeStruct((B * out_pl, out_lat * out_lon, two_c), x.dtype),
        grid_spec=pltpu.PrefetchScalarGridSpec(
            num_scalar_prefetch=0,
            grid=(B * in_pl, n_lat),
            in_specs=[
                # activations: one contiguous (2*tj, out_lon, 2C) slab per step,
                # pipelined / double-buffered over the grid.
                pl.BlockSpec((None, 2 * tj, out_lon, two_c),
                             lambda bp, jt: (bp, jt, 0, 0)),
                # constants: whole arrays resident in VMEM (not double-buffered)
                pl.BlockSpec(memory_space=pltpu.MemorySpace.VMEM),   # w0t
                pl.BlockSpec(memory_space=pltpu.MemorySpace.VMEM),   # w1t
                pl.BlockSpec(memory_space=pltpu.MemorySpace.VMEM),   # srow
                pl.BlockSpec(memory_space=pltpu.MemorySpace.VMEM),   # brow
            ],
            out_specs=pl.BlockSpec((None, tj * out_lon, two_c),
                                   lambda bp, jt: (bp, jt, 0)),
        ),
        compiler_params=pltpu.CompilerParams(
            dimension_semantics=("parallel", "parallel"),
            # 48 MiB: safe headroom on v7x (64 MiB physical), plenty on v5e/v6e.
            vmem_limit_bytes=int(vmem_limit_mib) * 1024 * 1024,
        ),
    )(xr, w0t, w1t, srow, brow)

    # free metadata reshape -- no transpose, no extra HBM pass
    return out.reshape(B, out_pl * out_lat * out_lon, two_c)


def _reference_downsample3d(x, gamma, beta, w, input_resolution, output_resolution, eps=1e-5):
    """Plain-JAX reference mirroring the PyTorch DownSample3D.forward exactly."""
    B, N, C = x.shape
    in_pl, in_lat, in_lon = input_resolution
    out_pl, out_lat, out_lon = output_resolution
    h_pad = out_lat * 2 - in_lat
    w_pad = out_lon * 2 - in_lon
    pad_top, pad_left = h_pad // 2, w_pad // 2
    xr = x.reshape(B, in_pl, in_lat, in_lon, C)
    xr = jnp.pad(xr, ((0, 0), (0, 0),
                      (pad_top, h_pad - pad_top),
                      (pad_left, w_pad - pad_left),
                      (0, 0)))
    xr = xr.reshape(B, in_pl, out_lat, 2, out_lon, 2, C)
    xr = jnp.transpose(xr, (0, 1, 2, 4, 3, 5, 6))
    xr = xr.reshape(B, out_pl * out_lat * out_lon, 4 * C)
    mean = jnp.mean(xr, axis=-1, keepdims=True)
    var = jnp.mean((xr - mean) ** 2, axis=-1, keepdims=True)
    xn = (xr - mean) / jnp.sqrt(var + eps) * gamma + beta
    return jnp.einsum("bnk,ok->bno", xn, w)


if __name__ == "__main__":
    # Small shapes consistent with the module; odd lat/lon exercise ZeroPad3d
    # (odd lat -> in-kernel mask path, odd lon -> wrapper pad path).
    B, C = 2, 4
    in_res = (2, 15, 15)      # (pressure levels, lat, lon)
    out_res = (2, 8, 8)
    N = in_res[0] * in_res[1] * in_res[2]

    key = jax.random.PRNGKey(0)
    kx, kw, kg, kb = jax.random.split(key, 4)
    x = jax.random.normal(kx, (B, N, C), dtype=jnp.float32)

    bound = 1.0 / math.sqrt(4 * C)
    w = jax.random.uniform(kw, (2 * C, 4 * C), minval=-bound, maxval=bound, dtype=jnp.float32)
    gamma = 1.0 + 0.1 * jax.random.normal(kg, (4 * C,), dtype=jnp.float32)
    beta = 0.1 * jax.random.normal(kb, (4 * C,), dtype=jnp.float32)

    y_ref = _reference_downsample3d(x, gamma, beta, w, in_res, out_res)

    # f32 MXU path: tight tolerance against the f32 reference.
    fwd_f32 = jax.jit(functools.partial(downsample3d_forward,
                                        input_resolution=in_res,
                                        output_resolution=out_res,
                                        use_bf16=False))
    y32 = jax.block_until_ready(fwd_f32(x, gamma, beta, w))
    assert y32.shape == (B, out_res[0] * out_res[1] * out_res[2], 2 * C), y32.shape
    assert jnp.allclose(y32, y_ref, atol=2e-4, rtol=2e-4), \
        f"f32 path mismatch: max abs err {jnp.max(jnp.abs(y32 - y_ref))}"

    # default perf path: bf16 MXU inputs (f32 accumulation) -> looser tolerance.
    fwd_bf16 = jax.jit(functools.partial(downsample3d_forward,
                                         input_resolution=in_res,
                                         output_resolution=out_res,
                                         use_bf16=True))
    y16 = jax.block_until_ready(fwd_bf16(x, gamma, beta, w))
    assert jnp.allclose(y16, y_ref, atol=5e-2, rtol=5e-2), \
        f"bf16 path mismatch: max abs err {jnp.max(jnp.abs(y16 - y_ref))}"

    print("KERNEL_OK")
</pallas_src>

<mosaic_0001>
module attributes {stable_mosaic.version = 11 : i64} {
  func.func @_downsample_kernel(%arg0: i32, %arg1: i32, %arg2: memref<1x8x8x8xf32, #tpu.memory_space<vmem>>, %arg3: memref<8x8xf32, #tpu.memory_space<vmem>>, %arg4: memref<8x8xf32, #tpu.memory_space<vmem>>, %arg5: memref<1x8xf32, #tpu.memory_space<vmem>>, %arg6: memref<1x8xf32, #tpu.memory_space<vmem>>, %arg7: memref<1x32x8xf32, #tpu.memory_space<vmem>>) attributes {dimension_semantics = [#tpu.dimension_semantics<parallel>, #tpu.dimension_semantics<parallel>], iteration_bounds = array<i64: 4, 2>, scalar_prefetch = 0 : i64, scratch_operands = 0 : i64, tpu.core_type = #tpu.core_type<tc>, window_params = [{transform_indices = @transform_0, window_bounds = array<i64: 1, 8, 8, 8>}, {pipeline_mode = #tpu.pipeline_mode<synchronous>, transform_indices = @transform_1, window_bounds = array<i64: 8, 8>}, {pipeline_mode = #tpu.pipeline_mode<synchronous>, transform_indices = @transform_2, window_bounds = array<i64: 8, 8>}, {pipeline_mode = #tpu.pipeline_mode<synchronous>, transform_indices = @transform_3, window_bounds = array<i64: 1, 8>}, {pipeline_mode = #tpu.pipeline_mode<synchronous>, transform_indices = @transform_4, window_bounds = array<i64: 1, 8>}, {transform_indices = @transform_5, window_bounds = array<i64: 1, 32, 8>}]} {
    %c0 = arith.constant 0 : index
    %c0_0 = arith.constant 0 : index
    %c0_1 = arith.constant 0 : index
    %c0_2 = arith.constant 0 : index
    %0 = vector.load %arg2[%c0, %c0_0, %c0_1, %c0_2] : memref<1x8x8x8xf32, #tpu.memory_space<vmem>>, vector<1x8x8x8xf32>
    %1 = vector.shape_cast %0 : vector<1x8x8x8xf32> to vector<8x8x8xf32>
    %c8_i32 = arith.constant 8 : i32
    %2 = arith.muli %arg1, %c8_i32 : i32
    %3 = tpu.iota {dimensions = array<i32: 0>} : vector<8x1x1xi32>
    %4 = vector.broadcast %2 : i32 to vector<8x1x1xi32>
    %5 = arith.addi %4, %3 : vector<8x1x1xi32>
    %c15_i32 = arith.constant 15 : i32
    %6 = vector.broadcast %c15_i32 : i32 to vector<8x1x1xi32>
    %7 = arith.cmpi slt, %5, %6 : vector<8x1x1xi32>
    %cst = arith.constant 0.000000e+00 : f32
    %8 = vector.broadcast %cst : f32 to vector<8x8x8xf32>
    %9 = vector.shape_cast %7 : vector<8x1x1xi1> to vector<8x1x1xi1>
    %10 = vector.broadcast %9 : vector<8x1x1xi1> to vector<8x8x8xi1>
    %11 = arith.select %10, %1, %8 : vector<8x8x8xi1>, vector<8x8x8xf32>
    %12 = vector.shape_cast %11 : vector<8x8x8xf32> to vector<4x2x8x8xf32>
    %13 = vector.extract_strided_slice %12 {offsets = [0, 0, 0, 0], sizes = [4, 1, 8, 8], strides = [1, 1, 1, 1]} : vector<4x2x8x8xf32> to vector<4x1x8x8xf32>
    %14 = vector.shape_cast %13 : vector<4x1x8x8xf32> to vector<4x8x8xf32>
    %15 = vector.shape_cast %14 : vector<4x8x8xf32> to vector<32x8xf32>
    %16 = vector.extract_strided_slice %12 {offsets = [0, 1, 0, 0], sizes = [4, 1, 8, 8], strides = [1, 1, 1, 1]} : vector<4x2x8x8xf32> to vector<4x1x8x8xf32>
    %17 = vector.shape_cast %16 : vector<4x1x8x8xf32> to vector<4x8x8xf32>
    %18 = vector.shape_cast %17 : vector<4x8x8xf32> to vector<32x8xf32>
    %cst_3 = arith.constant dense<0.000000e+00> : vector<32xf32>
    %19 = vector.multi_reduction <add>, %15, %cst_3 [1] : vector<32x8xf32> to vector<32xf32>
    %20 = vector.shape_cast %19 : vector<32xf32> to vector<32x1xf32>
    %cst_4 = arith.constant dense<0.000000e+00> : vector<32xf32>
    %21 = vector.multi_reduction <add>, %18, %cst_4 [1] : vector<32x8xf32> to vector<32xf32>
    %22 = vector.shape_cast %21 : vector<32xf32> to vector<32x1xf32>
    %23 = arith.addf %20, %22 : vector<32x1xf32>
    %cst_5 = arith.constant 6.250000e-02 : f32
    %24 = vector.broadcast %cst_5 : f32 to vector<32x1xf32>
    %25 = arith.mulf %23, %24 : vector<32x1xf32>
    %26 = arith.mulf %15, %15 : vector<32x8xf32>
    %cst_6 = arith.constant dense<0.000000e+00> : vector<32xf32>
    %27 = vector.multi_reduction <add>, %26, %cst_6 [1] : vector<32x8xf32> to vector<32xf32>
    %28 = vector.shape_cast %27 : vector<32xf32> to vector<32x1xf32>
    %29 = arith.mulf %18, %18 : vector<32x8xf32>
    %cst_7 = arith.constant dense<0.000000e+00> : vector<32xf32>
    %30 = vector.multi_reduction <add>, %29, %cst_7 [1] : vector<32x8xf32> to vector<32xf32>
    %31 = vector.shape_cast %30 : vector<32xf32> to vector<32x1xf32>
    %32 = arith.addf %28, %31 : vector<32x1xf32>
    %cst_8 = arith.constant 6.250000e-02 : f32
    %33 = vector.broadcast %cst_8 : f32 to vector<32x1xf32>
    %34 = arith.mulf %32, %33 : vector<32x1xf32>
    %35 = arith.mulf %25, %25 : vector<32x1xf32>
    %36 = arith.subf %34, %35 : vector<32x1xf32>
    %cst_9 = arith.constant 9.99999974E-6 : f32
    %37 = vector.broadcast %cst_9 : f32 to vector<32x1xf32>
    %38 = arith.addf %36, %37 : vector<32x1xf32>
    %39 = math.rsqrt %38 : vector<32x1xf32>
    %c0_10 = arith.constant 0 : index
    %c0_11 = arith.constant 0 : index
    %40 = vector.load %arg3[%c0_10, %c0_11] : memref<8x8xf32, #tpu.memory_space<vmem>>, vector<8x8xf32>
    %cst_12 = arith.constant dense<0.000000e+00> : vector<32x8xf32>
    %41 = tpu.matmul %15, %40, %cst_12 {dimension_numbers = #tpu.dot_dimension_numbers<[1], [0], [0], [1], [0, 0, 1, 1], [], []>} : vector<32x8xf32>, vector<8x8xf32>, vector<32x8xf32> -> vector<32x8xf32>
    %c0_13 = arith.constant 0 : index
    %c0_14 = arith.constant 0 : index
    %42 = vector.load %arg4[%c0_13, %c0_14] : memref<8x8xf32, #tpu.memory_space<vmem>>, vector<8x8xf32>
    %cst_15 = arith.constant dense<0.000000e+00> : vector<32x8xf32>
    %43 = tpu.matmul %18, %42, %cst_15 {dimension_numbers = #tpu.dot_dimension_numbers<[1], [0], [0], [1], [0, 0, 1, 1], [], []>} : vector<32x8xf32>, vector<8x8xf32>, vector<32x8xf32> -> vector<32x8xf32>
    %44 = arith.addf %41, %43 : vector<32x8xf32>
    %c0_16 = arith.constant 0 : index
    %c0_17 = arith.constant 0 : index
    %45 = vector.load %arg5[%c0_16, %c0_17] : memref<1x8xf32, #tpu.memory_space<vmem>>, vector<1x8xf32>
    %46 = vector.broadcast %25 : vector<32x1xf32> to vector<32x8xf32>
    %47 = vector.broadcast %45 : vector<1x8xf32> to vector<32x8xf32>
    %48 = arith.mulf %46, %47 : vector<32x8xf32>
    %49 = arith.subf %44, %48 : vector<32x8xf32>
    %50 = vector.broadcast %39 : vector<32x1xf32> to vector<32x8xf32>
    %51 = arith.mulf %49, %50 : vector<32x8xf32>
    %c0_18 = arith.constant 0 : index
    %c0_19 = arith.constant 0 : index
    %52 = vector.load %arg6[%c0_18, %c0_19] : memref<1x8xf32, #tpu.memory_space<vmem>>, vector<1x8xf32>
    %53 = vector.broadcast %52 : vector<1x8xf32> to vector<32x8xf32>
    %54 = arith.addf %51, %53 : vector<32x8xf32>
    %c0_20 = arith.constant 0 : index
    %c0_21 = arith.constant 0 : index
    %c0_22 = arith.constant 0 : index
    %55 = vector.load %arg7[%c0_20, %c0_21, %c0_22] : memref<1x32x8xf32, #tpu.memory_space<vmem>>, vector<1x32x8xf32>
    %56 = vector.shape_cast %55 : vector<1x32x8xf32> to vector<32x8xf32>
    %57 = vector.shape_cast %54 : vector<32x8xf32> to vector<1x32x8xf32>
    tpu.vector_store %arg7[%c0_20, %c0_21, %c0_22], %57 {strides = array<i32>} : memref<1x32x8xf32, #tpu.memory_space<vmem>>, vector<1x32x8xf32>,
    return
  }
  func.func @transform_0(%arg0: i32, %arg1: i32) -> (i32, i32, i32, i32) {
    %c0_i32 = arith.constant 0 : i32
    %c0_i32_0 = arith.constant 0 : i32
    %c0_i32_1 = arith.constant 0 : i32
    return %arg0, %arg1, %c0_i32, %c0_i32_0 : i32, i32, i32, i32
  }
  func.func @transform_1(%arg0: i32, %arg1: i32) -> (i32, i32) {
    %c0_i32 = arith.constant 0 : i32
    %c0_i32_0 = arith.constant 0 : i32
    %c0_i32_1 = arith.constant 0 : i32
    return %c0_i32, %c0_i32_0 : i32, i32
  }
  func.func @transform_2(%arg0: i32, %arg1: i32) -> (i32, i32) {
    %c0_i32 = arith.constant 0 : i32
    %c0_i32_0 = arith.constant 0 : i32
    %c0_i32_1 = arith.constant 0 : i32
    return %c0_i32, %c0_i32_0 : i32, i32
  }
  func.func @transform_3(%arg0: i32, %arg1: i32) -> (i32, i32) {
    %c0_i32 = arith.constant 0 : i32
    %c0_i32_0 = arith.constant 0 : i32
    %c0_i32_1 = arith.constant 0 : i32
    return %c0_i32, %c0_i32_0 : i32, i32
  }
  func.func @transform_4(%arg0: i32, %arg1: i32) -> (i32, i32) {
    %c0_i32 = arith.constant 0 : i32
    %c0_i32_0 = arith.constant 0 : i32
    %c0_i32_1 = arith.constant 0 : i32
    return %c0_i32, %c0_i32_0 : i32, i32
  }
  func.func @transform_5(%arg0: i32, %arg1: i32) -> (i32, i32, i32) {
    %c0_i32 = arith.constant 0 : i32
    %c0_i32_0 = arith.constant 0 : i32
    return %arg0, %arg1, %c0_i32 : i32, i32, i32
  }
}

</mosaic_0001>

<llo_original>
// kernel: downsample3d_forward.1
$region0: #{downsample3d_forward.1}
  #allocation0 [shape = 'u32[]', space=smem, size = 0x4, offset = 0x4, fixed_abs, tag = 'smem constant byte address 0x4 - core index']
  #allocation1 [shape = 'u32[72,128]{1,0:T(1,128)}', space=vmem, size = 0x9000, scoped, tag = 'internal scratch']
  %s0 = inlined_call_operand.vmem [shape: f32[4,15,8,8], index: 0, kind: input, shape index: {}]
  %s1 = inlined_call_operand.vmem [shape: f32[8,8], index: 1, kind: input, shape index: {}]
  %s2 = inlined_call_operand.vmem [shape: f32[8,8], index: 2, kind: input, shape index: {}]
  %s3 = inlined_call_operand.vmem [shape: f32[1,8], index: 3, kind: input, shape index: {}]
  %s4 = inlined_call_operand.vmem [shape: f32[1,8], index: 4, kind: input, shape index: {}]
  %s5 = inlined_call_operand.vmem [shape: f32[4,64,8], index: 5, kind: output, shape index: {}]
  %s6 = sld [smem:[#allocation0]]
  $region53: #{downsample3d_forward.1} parent=0
    _
  %s8 = ssub.s32 1, %s6
  %s9 = scalar_select 0, %s8, %s6
  loop: start=0, step=1, limit=10
  $region2: #{downsample3d_forward.1} parent=0 // loop_pre_header
    _
  $region3: #{downsample3d_forward.1} parent=0 // loop_header
    %s11 = sphi 0, %s15
    %p12 = scmp.ge.s32.totalorder %s11, 10
    %s18 = sphi 0, %s30
    %s19 = sphi 0, %s26
    %s20 = sphi 0, %s18
    %s21 = sphi 0, %s19
    %s22 = sphi 0, %s20
    %s23 = sphi 0, %s21
    %s35 = sphi 0, %s37
    %s38 = sphi 0, %s35
    %s39 = sphi 0, %s38
    %s55 = sphi 0, %s39
    %s59 = sphi 0, %s59
    %s61 = sphi 0, %s59
    %s62 = sphi 0, %s61
    %s76 = sphi 0, %s62
    %s80 = sphi 0, %s80
    %s82 = sphi 0, %s80
    %s83 = sphi 0, %s82
    %s97 = sphi 0, %s83
    %s101 = sphi 0, %s101
    %s103 = sphi 0, %s101
    %s104 = sphi 0, %s103
    %s118 = sphi 0, %s104
    %s122 = sphi 0, %s122
    %s124 = sphi 0, %s122
    %s125 = sphi 0, %s124
    %s139 = sphi 0, %s125
    %s147 = sphi 0, %s149
    %s150 = sphi 0, %s147
    %s151 = sphi 0, %s150
    %s167 = sphi 0, %s151
  $region4: #{downsample3d_forward.1} parent=0 // loop_header_branch
    %14 = sbr.rel (%p12) target = $region8
  $region5: #{downsample3d_forward.1} parent=0 // loop_body
    %s16 = ssub.s32 %s11, 1
    %s17 = ssub.s32 %s11, 2
    %s24 = sadd.s32 1, %s19
    %p25 = scmp.ge.s32.totalorder %s24, 2
    %s26 = scalar_select %p25, 0, %s24
    %s27 = sadd.s32 1, %s18
    %s28 = scalar_select %p25, %s27, %s18
    %p29 = scmp.ge.s32.totalorder %s28, 4
    %s30 = scalar_select %p29, 0, %s28
    %s31 = ssub.s32 %s18, %s30
    %s32 = ssub.s32 %s19, %s26
    %s33 = sor.u32 %s31, %s32
    %p34 = scmp.eq.s32.totalorder %s33, 0
    %s36 = sadd.s32 %s35, 1
    %s37 = scalar_select %p34, %s35, %s36
    %p40 = pneg %p34
    %p41 = scmp.eq.s32.totalorder %s11, 7
    %p42 = por %p40, %p41
    %p43 = scmp.ne.s32.totalorder %s35, %s38
    %p44 = scmp.eq.s32.totalorder %s11, 0
    %p45 = por %p43, %p44
    %p46 = scmp.ne.s32.totalorder %s35, %s38
    %p47 = scmp.eq.s32.totalorder %s16, 7
    %p48 = por %p46, %p47
    %p49 = scmp.ne.s32.totalorder %s38, %s39
    %p50 = scmp.eq.s32.totalorder %s16, 0
    %p51 = por %p49, %p50
    %p52 = scmp.ne.s32.totalorder %s38, %s39
    %p53 = scmp.eq.s32.totalorder %s17, 7
    %p54 = por %p52, %p53
    %p56 = scmp.ne.s32.totalorder %s39, %s55
    %p57 = scmp.eq.s32.totalorder %s17, 0
    %p58 = por %p56, %p57
    %s60 = sadd.s32 %s59, 1
    %p63 = scmp.eq.s32.totalorder %s11, 7
    %p64 = scmp.ne.s32.totalorder %s59, %s61
    %p65 = scmp.eq.s32.totalorder %s11, 0
    %p66 = por %p64, %p65
    %p67 = scmp.ne.s32.totalorder %s59, %s61
    %p68 = scmp.eq.s32.totalorder %s16, 7
    %p69 = por %p67, %p68
    %p70 = scmp.ne.s32.totalorder %s61, %s62
    %p71 = scmp.eq.s32.totalorder %s16, 0
    %p72 = por %p70, %p71
    %p73 = scmp.ne.s32.totalorder %s61, %s62
    %p74 = scmp.eq.s32.totalorder %s17, 7
    %p75 = por %p73, %p74
    %p77 = scmp.ne.s32.totalorder %s62, %s76
    %p78 = scmp.eq.s32.totalorder %s17, 0
    %p79 = por %p77, %p78
    %s81 = sadd.s32 %s80, 1
    %p84 = scmp.eq.s32.totalorder %s11, 7
    %p85 = scmp.ne.s32.totalorder %s80, %s82
    %p86 = scmp.eq.s32.totalorder %s11, 0
    %p87 = por %p85, %p86
    %p88 = scmp.ne.s32.totalorder %s80, %s82
    %p89 = scmp.eq.s32.totalorder %s16, 7
    %p90 = por %p88, %p89
    %p91 = scmp.ne.s32.totalorder %s82, %s83
    %p92 = scmp.eq.s32.totalorder %s16, 0
    %p93 = por %p91, %p92
    %p94 = scmp.ne.s32.totalorder %s82, %s83
    %p95 = scmp.eq.s32.totalorder %s17, 7
    %p96 = por %p94, %p95
    %p98 = scmp.ne.s32.totalorder %s83, %s97
    %p99 = scmp.eq.s32.totalorder %s17, 0
    %p100 = por %p98, %p99
    %s102 = sadd.s32 %s101, 1
    %p105 = scmp.eq.s32.totalorder %s11, 7
    %p106 = scmp.ne.s32.totalorder %s101, %s103
    %p107 = scmp.eq.s32.totalorder %s11, 0
    %p108 = por %p106, %p107
    %p109 = scmp.ne.s32.totalorder %s101, %s103
    %p110 = scmp.eq.s32.totalorder %s16, 7
    %p111 = por %p109, %p110
    %p112 = scmp.ne.s32.totalorder %s103, %s104
    %p113 = scmp.eq.s32.totalorder %s16, 0
    %p114 = por %p112, %p113
    %p115 = scmp.ne.s32.totalorder %s103, %s104
    %p116 = scmp.eq.s32.totalorder %s17, 7
    %p117 = por %p115, %p116
    %p119 = scmp.ne.s32.totalorder %s104, %s118
    %p120 = scmp.eq.s32.totalorder %s17, 0
    %p121 = por %p119, %p120
    %s123 = sadd.s32 %s122, 1
    %p126 = scmp.eq.s32.totalorder %s11, 7
    %p127 = scmp.ne.s32.totalorder %s122, %s124
    %p128 = scmp.eq.s32.totalorder %s11, 0
    %p129 = por %p127, %p128
    %p130 = scmp.ne.s32.totalorder %s122, %s124
    %p131 = scmp.eq.s32.totalorder %s16, 7
    %p132 = por %p130, %p131
    %p133 = scmp.ne.s32.totalorder %s124, %s125
    %p134 = scmp.eq.s32.totalorder %s16, 0
    %p135 = por %p133, %p134
    %p136 = scmp.ne.s32.totalorder %s124, %s125
    %p137 = scmp.eq.s32.totalorder %s17, 7
    %p138 = por %p136, %p137
    %p140 = scmp.ne.s32.totalorder %s125, %s139
    %p141 = scmp.eq.s32.totalorder %s17, 0
    %p142 = por %p140, %p141
    %s143 = ssub.s32 %s18, %s30
    %s144 = ssub.s32 %s19, %s26
    %s145 = sor.u32 %s143, %s144
    %p146 = scmp.eq.s32.totalorder %s145, 0
    %s148 = sadd.s32 %s147, 1
    %s149 = scalar_select %p146, %s147, %s148
    %p152 = pneg %p146
    %p153 = scmp.eq.s32.totalorder %s11, 7
    %p154 = por %p152, %p153
    %p155 = scmp.ne.s32.totalorder %s147, %s150
    %p156 = scmp.eq.s32.totalorder %s11, 0
    %p157 = por %p155, %p156
    %p158 = scmp.ne.s32.totalorder %s147, %s150
    %p159 = scmp.eq.s32.totalorder %s16, 7
    %p160 = por %p158, %p159
    %p161 = scmp.ne.s32.totalorder %s150, %s151
    %p162 = scmp.eq.s32.totalorder %s16, 0
    %p163 = por %p161, %p162
    %p164 = scmp.ne.s32.totalorder %s150, %s151
    %p165 = scmp.eq.s32.totalorder %s17, 7
    %p166 = por %p164, %p165
    %p168 = scmp.ne.s32.totalorder %s151, %s167
    %p169 = scmp.eq.s32.totalorder %s17, 0
    %p170 = por %p168, %p169
    %p171 = scmp.le.s32.totalorder 1, %s11
    %p172 = scmp.lt.s32.totalorder %s11, 9
    %p173 = pnand %p171, %p172
    %p174 = pneg %p173
    // Predicated region
    $region9: #{downsample3d_forward.1} parent=5 // pred_check
      _
    $region10: #{downsample3d_forward.1} parent=5 // pred_check_branch
      %176 = sbr.rel (%p173) target = $region12
    $region11: #{downsample3d_forward.1} parent=5 // pred_region
      %s177 = ssub.s32 %s11, 1
      // Predicated region
      $region13: #{downsample3d_forward.1} parent=11 // pred_check
        %p178 = pneg %p72
      $region14: #{downsample3d_forward.1} parent=11 // pred_check_branch
        %180 = sbr.rel (%p178) target = $region16
      $region15: #{downsample3d_forward.1} parent=11 // pred_region
        _
      $region16: #{downsample3d_forward.1} parent=11 // pred_fallthru
        _
      // Predicated region
      $region17: #{downsample3d_forward.1} parent=11 // pred_check
        %p181 = pneg %p93
      $region18: #{downsample3d_forward.1} parent=11 // pred_check_branch
        %183 = sbr.rel (%p181) target = $region20
      $region19: #{downsample3d_forward.1} parent=11 // pred_region
        _
      $region20: #{downsample3d_forward.1} parent=11 // pred_fallthru
        _
      // Predicated region
      $region21: #{downsample3d_forward.1} parent=11 // pred_check
        %p184 = pneg %p114
      $region22: #{downsample3d_forward.1} parent=11 // pred_check_branch
        %186 = sbr.rel (%p184) target = $region24
      $region23: #{downsample3d_forward.1} parent=11 // pred_region
        _
      $region24: #{downsample3d_forward.1} parent=11 // pred_fallthru
        _
      // Predicated region
      $region25: #{downsample3d_forward.1} parent=11 // pred_check
        %p187 = pneg %p135
      $region26: #{downsample3d_forward.1} parent=11 // pred_check_branch
        %189 = sbr.rel (%p187) target = $region28
      $region27: #{downsample3d_forward.1} parent=11 // pred_region
        _
      $region28: #{downsample3d_forward.1} parent=11 // pred_fallthru
        _
    $region12: #{downsample3d_forward.1} parent=5 // pred_fallthru
      _
    %p190 = scmp.lt.s32.totalorder %s11, 8
    // Predicated region
    $region29: #{downsample3d_forward.1} parent=5 // pred_check
      %p191 = pneg %p190
    $region30: #{downsample3d_forward.1} parent=5 // pred_check_branch
      %193 = sbr.rel (%p191) target = $region32
    $region31: #{downsample3d_forward.1} parent=5 // pred_region
      // Predicated region
      $region33: #{downsample3d_forward.1} parent=31 // pred_check
        %p194 = pneg %p45
      $region34: #{downsample3d_forward.1} parent=31 // pred_check_branch
        %196 = sbr.rel (%p194) target = $region36
      $region35: #{downsample3d_forward.1} parent=31 // pred_region
        %s197 = smul.u32 8, %s19
        %s198 = ssub.s32 15, %s197
        %p199 = scmp.lt.s32.totalorder %s198, 8
        %s200 = scalar_select %p199, %s198, 8
        %s201 = smul.u32 8, %s200
        %p202 = scmp.lt.s32.totalorder %s18, 3
        %s203 = scalar_select %p202, %s18, 3
        %p204 = scmp.lt.s32.totalorder %s197, 14
        %s205 = scalar_select %p204, %s197, 14
        %s206 = smul.addr %s203, 15
        %s207 = sadd.s32 %s205, %s206
        %s208 = smul.addr %s207, 8
        %s209 = scalar_lea.vmem %s0, %s208
        %s210 = smul.u32 8, %s19
        %s211 = ssub.s32 15, %s210
        %p212 = scmp.lt.s32.totalorder %s211, 8
        %s213 = scalar_select %p212, %s211, 8
        %s214 = smul.u32 8, %s213
      $region36: #{downsample3d_forward.1} parent=31 // pred_fallthru
        _
    $region32: #{downsample3d_forward.1} parent=5 // pred_fallthru
      _
    %p215 = scmp.le.s32.totalorder 1, %s11
    %p216 = scmp.lt.s32.totalorder %s11, 9
    %p217 = pnand %p215, %p216
    %p218 = pneg %p217
    // Predicated region
    $region37: #{downsample3d_forward.1} parent=5 // pred_check
      _
    $region38: #{downsample3d_forward.1} parent=5 // pred_check_branch
      %220 = sbr.rel (%p217) target = $region40
    $region39: #{downsample3d_forward.1} parent=5 // pred_region
      %s221 = ssub.s32 %s11, 1
      %s222 = smul.u32 8, %s21
      %s223 = ssub.s32 15, %s222
      %p224 = scmp.lt.s32.totalorder %s223, 8
      %s225 = scalar_select %p224, %s223, 8
      %s226 = smul.u32 8, %s225
      %p227 = scmp.lt.s32.totalorder %s20, 3
      %s228 = scalar_select %p227, %s20, 3
      %p229 = scmp.lt.s32.totalorder %s222, 14
      %s230 = scalar_select %p229, %s222, 14
      %s231 = smul.addr %s228, 15
      %s232 = sadd.s32 %s230, %s231
      %s233 = smul.addr %s232, 8
      %s234 = scalar_lea.vmem %s0, %s233
      %p235 = pneg %p51
      %p236 = pneg %p48
      %p237 = pneg %p72
      %p238 = pneg %p69
      %p239 = pneg %p93
      %p240 = pneg %p90
      %p241 = pneg %p114
      %p242 = pneg %p111
      %p243 = pneg %p135
      %p244 = pneg %p132
      %p245 = pneg %p163
      %p246 = pneg %p160
      %s247 = smul.u32 4, %s21
      %p248 = scmp.lt.s32.totalorder %s20, 3
      %s249 = scalar_select %p248, %s20, 3
      %p250 = scmp.lt.s32.totalorder %s247, 7
      %s251 = scalar_select %p250, %s247, 7
      %s252 = smul.addr %s249, 8
      %s253 = sadd.s32 %s251, %s252
      %s254 = smul.addr %s253, 8
      %s255 = scalar_lea.vmem %s5, %s254
      %s256 = smul.u32 8, %s21
      %s257 = ssub.s32 15, %s256
      %p258 = scmp.lt.s32.totalorder %s257, 8
      %s259 = scalar_select %p258, %s257, 8
      %s260 = smul.u32 8, %s259
      %p261 = scmp.lt.s32.totalorder %s20, 3
      %s262 = scalar_select %p261, %s20, 3
      %p263 = scmp.lt.s32.totalorder %s256, 14
      %s264 = scalar_select %p263, %s256, 14
      %s265 = smul.addr %s262, 15
      %s266 = sadd.s32 %s264, %s265
      %s267 = smul.addr %s266, 8
      %s268 = scalar_lea.vmem %s0, %s267
      %s269 = smul.u32 8, %s21
      %s270 = ssub.s32 15, %s269
      %p271 = scmp.lt.s32.totalorder %s270, 8
      %s272 = scalar_select %p271, %s270, 8
      %s273 = smul.u32 8, %s272
      %s274 = smul.u32 4, %s21
      %p275 = scmp.lt.s32.totalorder %s20, 3
      %s276 = scalar_select %p275, %s20, 3
      %p277 = scmp.lt.s32.totalorder %s274, 7
      %s278 = scalar_select %p277, %s274, 7
      %s279 = smul.addr %s276, 8
      %s280 = sadd.s32 %s278, %s279
      %s281 = smul.addr %s280, 8
      %s282 = scalar_lea.vmem %s5, %s281
      %s283 = smul.u32 4, %s21
      %v284 = vld [vmem:[%s268] sm:$0xff]
      %v285 = vld [vmem:[%s268 + $0x8] sm:$0xff]
      %v286 = vld [vmem:[%s268 + $0x10] sm:$0xff]
      %v287 = vld [vmem:[%s268 + $0x18] sm:$0xff]
      %v288 = vld [vmem:[%s268 + $0x20] sm:$0xff]
      %v289 = vld [vmem:[%s268 + $0x28] sm:$0xff]
      %v290 = vld [vmem:[%s268 + $0x30] sm:$0xff]
      %v291 = vld [vmem:[%s268 + $0x38] sm:$0xff]
      %s292 = smul.u32 %s21, 8
      %v293 = vstv %s292
      %v294 = vadd.s32 %v293, 1
      %v295 = vadd.s32 %v293, 2
      %v296 = vadd.s32 %v293, 3
      %v297 = vadd.s32 %v293, 4
      %v298 = vadd.s32 %v293, 5
      %v299 = vadd.s32 %v293, 6
      %v300 = vadd.s32 %v293, 7
      %vm301 = vcmp.lt.s32.totalorder %v293, 15
      %vm302 = vcmp.lt.s32.totalorder %v294, 15
      %vm303 = vcmp.lt.s32.totalorder %v295, 15
      %vm304 = vcmp.lt.s32.totalorder %v296, 15
      %vm305 = vcmp.lt.s32.totalorder %v297, 15
      %vm306 = vcmp.lt.s32.totalorder %v298, 15
      %vm307 = vcmp.lt.s32.totalorder %v299, 15
      %vm308 = vcmp.lt.s32.totalorder %v300, 15
      %v309 = vsel %vm301, 1, 0
      %v310 = vsel %vm302, 1, 0
      %v311 = vsel %vm303, 1, 0
      %v312 = vsel %vm304, 1, 0
      %v313 = vsel %vm305, 1, 0
      %v314 = vsel %vm306, 1, 0
      %v315 = vsel %vm307, 1, 0
      %v316 = vsel %vm308, 1, 0
      %vm317 = vcmp.eq.s32.totalorder %v309, 1
      %vm318 = vcmp.eq.s32.totalorder %v310, 1
      %vm319 = vcmp.eq.s32.totalorder %v311, 1
      %vm320 = vcmp.eq.s32.totalorder %v312, 1
      %vm321 = vcmp.eq.s32.totalorder %v313, 1
      %vm322 = vcmp.eq.s32.totalorder %v314, 1
      %vm323 = vcmp.eq.s32.totalorder %v315, 1
      %vm324 = vcmp.eq.s32.totalorder %v316, 1
      %v325 = vsel %vm317, %v284, 0.0
      %v326 = vsel %vm318, %v285, 0.0
      %v327 = vsel %vm319, %v286, 0.0
      %v328 = vsel %vm320, %v287, 0.0
      %v329 = vsel %vm321, %v288, 0.0
      %v330 = vsel %vm322, %v289, 0.0
      %v331 = vsel %vm323, %v290, 0.0
      %v332 = vsel %vm324, %v291, 0.0
      %vm333 = vcmask 64512
      %v334 = vsel %vm333, %v325, 0.0
      %335 = vadd.xlane.f32.xlu0 %v334
      %v336 = vpop.xlane.xlu0 %335
      %v337 = vsel %vm333, %v327, 0.0
      %338 = vadd.xlane.f32.xlu0 %v337
      %v339 = vpop.xlane.xlu0 %338
      %v340 = vsel %vm333, %v329, 0.0
      %341 = vadd.xlane.f32.xlu0 %v340
      %v342 = vpop.xlane.xlu0 %341
      %v343 = vsel %vm333, %v331, 0.0
      %344 = vadd.xlane.f32.xlu0 %v343
      %v345 = vpop.xlane.xlu0 %344
      %v346 = vsel %vm333, %v326, 0.0
      %347 = vadd.xlane.f32.xlu0 %v346
      %v348 = vpop.xlane.xlu0 %347
      %v349 = vsel %vm333, %v328, 0.0
      %350 = vadd.xlane.f32.xlu0 %v349
      %v351 = vpop.xlane.xlu0 %350
      %v352 = vsel %vm333, %v330, 0.0
      %353 = vadd.xlane.f32.xlu0 %v352
      %v354 = vpop.xlane.xlu0 %353
      %v355 = vsel %vm333, %v332, 0.0
      %356 = vadd.xlane.f32.xlu0 %v355
      %v357 = vpop.xlane.xlu0 %356
      %v358 = vadd.f32 %v336, %v348
      %v359 = vadd.f32 %v339, %v351
      %v360 = vadd.f32 %v342, %v354
      %v361 = vadd.f32 %v345, %v357
      %v362 = vmul.f32 %v358, 0.0625
      %v363 = vmul.f32 %v359, 0.0625
      %v364 = vmul.f32 %v360, 0.0625
      %v365 = vmul.f32 %v361, 0.0625
      %v366 = vmul.f32 %v325, %v325
      %v367 = vmul.f32 %v327, %v327
      %v368 = vmul.f32 %v329, %v329
      %v369 = vmul.f32 %v331, %v331
      %v370 = vsel %vm333, %v366, 0.0
      %371 = vadd.xlane.f32.xlu0 %v370
      %v372 = vpop.xlane.xlu0 %371
      %v373 = vsel %vm333, %v367, 0.0
      %374 = vadd.xlane.f32.xlu0 %v373
      %v375 = vpop.xlane.xlu0 %374
      %v376 = vsel %vm333, %v368, 0.0
      %377 = vadd.xlane.f32.xlu0 %v376
      %v378 = vpop.xlane.xlu0 %377
      %v379 = vsel %vm333, %v369, 0.0
      %380 = vadd.xlane.f32.xlu0 %v379
      %v381 = vpop.xlane.xlu0 %380
      %v382 = vmul.f32 %v326, %v326
      %v383 = vmul.f32 %v328, %v328
      %v384 = vmul.f32 %v330, %v330
      %v385 = vmul.f32 %v332, %v332
      %v386 = vsel %vm333, %v382, 0.0
      %387 = vadd.xlane.f32.xlu0 %v386
      %v388 = vpop.xlane.xlu0 %387
      %v389 = vsel %vm333, %v383, 0.0
      %390 = vadd.xlane.f32.xlu0 %v389
      %v391 = vpop.xlane.xlu0 %390
      %v392 = vsel %vm333, %v384, 0.0
      %393 = vadd.xlane.f32.xlu0 %v392
      %v394 = vpop.xlane.xlu0 %393
      %v395 = vsel %vm333, %v385, 0.0
      %396 = vadd.xlane.f32.xlu0 %v395
      %v397 = vpop.xlane.xlu0 %396
      %v398 = vadd.f32 %v372, %v388
      %v399 = vadd.f32 %v375, %v391
      %v400 = vadd.f32 %v378, %v394
      %v401 = vadd.f32 %v381, %v397
      %v402 = vmul.f32 %v398, 0.0625
      %v403 = vmul.f32 %v399, 0.0625
      %v404 = vmul.f32 %v400, 0.0625
      %v405 = vmul.f32 %v401, 0.0625
      %v406 = vmul.f32 %v362, %v362
      %v407 = vmul.f32 %v363, %v363
      %v408 = vmul.f32 %v364, %v364
      %v409 = vmul.f32 %v365, %v365
      %v410 = vsub.f32 %v402, %v406
      %v411 = vsub.f32 %v403, %v407
      %v412 = vsub.f32 %v404, %v408
      %v413 = vsub.f32 %v405, %v409
      %v414 = vadd.f32 %v410, 1e-05
      %v415 = vadd.f32 %v411, 1e-05
      %v416 = vadd.f32 %v412, 1e-05
      %v417 = vadd.f32 %v413, 1e-05
      %v418 = vrsqrt.pop %v414
      %v419 = vmul.f32 %v418, %v414
      %v420 = vmul.f32 %v419, %v418
      %v421 = vmul.f32 0.5, %v420
      %v422 = vsub.f32 1.5, %v421
      %v423 = vmul.f32 %v418, %v422
      %vm424 = vweird.f32 %v414
      %vm425 = vweird.f32 %v418
      %vm426 = vmor %vm424, %vm425
      %v427 = vsel %vm426, %v418, %v423
      %v428 = vrsqrt.pop %v415
      %v429 = vmul.f32 %v428, %v415
      %v430 = vmul.f32 %v429, %v428
      %v431 = vmul.f32 0.5, %v430
      %v432 = vsub.f32 1.5, %v431
      %v433 = vmul.f32 %v428, %v432
      %vm434 = vweird.f32 %v415
      %vm435 = vweird.f32 %v428
      %vm436 = vmor %vm434, %vm435
      %v437 = vsel %vm436, %v428, %v433
      %v438 = vrsqrt.pop %v416
      %v439 = vmul.f32 %v438, %v416
      %v440 = vmul.f32 %v439, %v438
      %v441 = vmul.f32 0.5, %v440
      %v442 = vsub.f32 1.5, %v441
      %v443 = vmul.f32 %v438, %v442
      %vm444 = vweird.f32 %v416
      %vm445 = vweird.f32 %v438
      %vm446 = vmor %vm444, %vm445
      %v447 = vsel %vm446, %v438, %v443
      %v448 = vrsqrt.pop %v417
      %v449 = vmul.f32 %v448, %v417
      %v450 = vmul.f32 %v449, %v448
      %v451 = vmul.f32 0.5, %v450
      %v452 = vsub.f32 1.5, %v451
      %v453 = vmul.f32 %v448, %v452
      %vm454 = vweird.f32 %v417
      %vm455 = vweird.f32 %v448
      %vm456 = vmor %vm454, %vm455
      %v457 = vsel %vm456, %v448, %v453
      %v458 = vld [vmem:[%s1] sm:$0xff]
      %v459 = vld [vmem:[%s2] sm:$0xff]
      %v461 = vsel %vm333, %v326, 0
      %v464 = vsel %vm333, %v328, 0
      %v467 = vsel %vm333, %v330, 0
      %v470 = vsel %vm333, %v332, 0
      %472 = vmatpush.msra.mxu0 0.0
      %473 = vmatpush.msra.mxu0 0.0
      %474 = vmatpush.msra.mxu0 0.0
      %475 = vmatpush.msra.mxu0 0.0
      %476 = vmatpush.msra.mxu0 0.0
      %477 = vmatpush.msra.mxu0 0.0
      %478 = vmatpush.msra.mxu0 0.0
      %479 = vmatpush.msra.mxu0 0.0
      %480 = vmatpush.msra.mxu0 0.0
      %481 = vmatpush.msra.mxu0 0.0
      %482 = vmatpush.msra.mxu0 0.0
      %483 = vmatpush.msra.mxu0 0.0
      %484 = vmatpush.msra.mxu0 0.0
      %485 = vmatpush.msra.mxu0 0.0
      %486 = vmatpush.msra.mxu0 0.0
      %487 = vmatpush.msra.mxu0 %v459
      %488 = vmatmul.f32.gmra.mxu0 %v461
      %v489 = vpop.f32.mrf.mxu0
      %v490 = vadd.f32 0.0, %v489
      %491 = vmatmul.f32.gmra.mxu0 %v464
      %v492 = vpop.f32.mrf.mxu0
      %v493 = vadd.f32 0.0, %v492
      %494 = vmatmul.f32.gmra.mxu0 %v467
      %v495 = vpop.f32.mrf.mxu0
      %v496 = vadd.f32 0.0, %v495
      %497 = vmatmul.f32.gmra.mxu0 %v470
      %v498 = vpop.f32.mrf.mxu0
      %v499 = vadd.f32 0.0, %v498
      %500 = vdwg.mxu0
      %v502 = vsel %vm333, %v325, 0
      %v505 = vsel %vm333, %v327, 0
      %v508 = vsel %vm333, %v329, 0
      %v511 = vsel %vm333, %v331, 0
      %513 = vmatpush.msra.mxu0 0.0
      %514 = vmatpush.msra.mxu0 0.0
      %515 = vmatpush.msra.mxu0 0.0
      %516 = vmatpush.msra.mxu0 0.0
      %517 = vmatpush.msra.mxu0 0.0
      %518 = vmatpush.msra.mxu0 0.0
      %519 = vmatpush.msra.mxu0 0.0
      %520 = vmatpush.msra.mxu0 0.0
      %521 = vmatpush.msra.mxu0 0.0
      %522 = vmatpush.msra.mxu0 0.0
      %523 = vmatpush.msra.mxu0 0.0
      %524 = vmatpush.msra.mxu0 0.0
      %525 = vmatpush.msra.mxu0 0.0
      %526 = vmatpush.msra.mxu0 0.0
      %527 = vmatpush.msra.mxu0 0.0
      %528 = vmatpush.msra.mxu0 %v458
      %529 = vmatmul.f32.gmra.mxu0 %v502
      %v530 = vpop.f32.mrf.mxu0
      %v531 = vadd.f32 %v490, %v530
      %532 = vmatmul.f32.gmra.mxu0 %v505
      %v533 = vpop.f32.mrf.mxu0
      %v534 = vadd.f32 %v493, %v533
      %535 = vmatmul.f32.gmra.mxu0 %v508
      %v536 = vpop.f32.mrf.mxu0
      %v537 = vadd.f32 %v496, %v536
      %538 = vmatmul.f32.gmra.mxu0 %v511
      %v539 = vpop.f32.mrf.mxu0
      %v540 = vadd.f32 %v499, %v539
      %541 = vdwg.mxu0
      %v542 = vld [vmem:[%s3] sm:$0x1]
      %v544 = vperm.slane %v542, 0
      %v546 = vmul.f32 %v362, %v544
      %v547 = vmul.f32 %v363, %v544
      %v548 = vmul.f32 %v364, %v544
      %v549 = vmul.f32 %v365, %v544
      %v550 = vsub.f32 %v531, %v546
      %v551 = vsub.f32 %v534, %v547
      %v552 = vsub.f32 %v537, %v548
      %v553 = vsub.f32 %v540, %v549
      %v554 = vmul.f32 %v550, %v427
      %v555 = vmul.f32 %v551, %v437
      %v556 = vmul.f32 %v552, %v447
      %v557 = vmul.f32 %v553, %v457
      %v558 = vld [vmem:[%s4] sm:$0x1]
      %v560 = vperm.slane %v558, 0
      %v562 = vadd.f32 %v554, %v560
      %v563 = vadd.f32 %v555, %v560
      %v564 = vadd.f32 %v556, %v560
      %v565 = vadd.f32 %v557, %v560
      %566 = vst.msk [vmem:[%s282] sm:$0xff] %vm333, %v562
      %567 = vst.msk [vmem:[%s282 + $0x8] sm:$0xff] %vm333, %v563
      %568 = vst.msk [vmem:[%s282 + $0x10] sm:$0xff] %vm333, %v564
      %569 = vst.msk [vmem:[%s282 + $0x18] sm:$0xff] %vm333, %v565
      %s570 = smul.u32 4, %s21
      %p571 = scmp.lt.s32.totalorder %s20, 3
      %s572 = scalar_select %p571, %s20, 3
      %p573 = scmp.lt.s32.totalorder %s570, 7
      %s574 = scalar_select %p573, %s570, 7
      %s575 = smul.addr %s572, 8
      %s576 = sadd.s32 %s574, %s575
      %s577 = smul.addr %s576, 8
      %s578 = scalar_lea.vmem %s5, %s577
      // Predicated region
      $region41: #{downsample3d_forward.1} parent=39 // pred_check
        %p579 = pneg %p160
      $region42: #{downsample3d_forward.1} parent=39 // pred_check_branch
        %581 = sbr.rel (%p579) target = $region44
      $region43: #{downsample3d_forward.1} parent=39 // pred_region
        %s582 = smul.u32 4, %s21
      $region44: #{downsample3d_forward.1} parent=39 // pred_fallthru
        _
    $region40: #{downsample3d_forward.1} parent=5 // pred_fallthru
      _
    %p583 = scmp.le.s32.totalorder 2, %s11
    // Predicated region
    $region45: #{downsample3d_forward.1} parent=5 // pred_check
      %p584 = pneg %p583
    $region46: #{downsample3d_forward.1} parent=5 // pred_check_branch
      %586 = sbr.rel (%p584) target = $region48
    $region47: #{downsample3d_forward.1} parent=5 // pred_region
      %s587 = ssub.s32 %s11, 2
      // Predicated region
      $region49: #{downsample3d_forward.1} parent=47 // pred_check
        %p588 = pneg %p166
      $region50: #{downsample3d_forward.1} parent=47 // pred_check_branch
        %590 = sbr.rel (%p588) target = $region52
      $region51: #{downsample3d_forward.1} parent=47 // pred_region
        %s591 = smul.u32 4, %s23
        %p592 = scmp.lt.s32.totalorder %s22, 3
        %s593 = scalar_select %p592, %s22, 3
        %p594 = scmp.lt.s32.totalorder %s591, 7
        %s595 = scalar_select %p594, %s591, 7
        %s596 = smul.addr %s593, 8
        %s597 = sadd.s32 %s595, %s596
        %s598 = smul.addr %s597, 8
        %s599 = scalar_lea.vmem %s5, %s598
      $region52: #{downsample3d_forward.1} parent=47 // pred_fallthru
        _
    $region48: #{downsample3d_forward.1} parent=5 // pred_fallthru
      _
  $region6: #{downsample3d_forward.1} parent=0 // loop_footer
    %s15 = sadd.s32 1, %s11
  $region7: #{downsample3d_forward.1} parent=0 // loop_footer_branch
    %10 = sbr.rel target = $region3
  $region8: #{downsample3d_forward.1} parent=0 // loop_exit
    _

</llo_original>
